<compile_context>
chip_gen: v7x
topology: tpu7x:2x2x1
jax: 0.10.0
libtpu: 0.0.40
codegen_flags: <defaults>
</compile_context>

<pallas_src>
import functools

import jax
import jax.numpy as jnp
from jax import lax
from jax.experimental import pallas as pl
from jax.experimental.pallas import tpu as pltpu


def _band_weights(w_hwio, W):
    """(3, 3, C, C) HWIO conv weights -> (3, W*C, W*C) block-banded matrices.

    A[dy, wi*C + ci, wo*C + co] = w[dy, wi - wo + 1, ci, co], zero where the
    tap falls outside the kernel (this implements zero "same" padding along
    the width axis), so   out_row[y] = sum_dy in_row[y + dy - 1] @ A[dy].
    """
    kH, kW, C, Co = w_hwio.shape
    wi = jnp.arange(W)[:, None]
    wo = jnp.arange(W)[None, :]
    dx = wi - wo + (kW // 2)
    valid = (dx >= 0) & (dx < kW)
    taps = w_hwio[:, jnp.clip(dx, 0, kW - 1)]                 # (kH, W, W, C, Co)
    taps = jnp.where(valid[None, :, :, None, None], taps, 0.0)
    return jnp.transpose(taps, (0, 1, 3, 2, 4)).reshape(kH, W * C, W * Co)


def _residual_conv_block_kernel(x_ref, w1_ref, b1_ref, w2_ref, b2_ref, o_ref,
                                xpad, ypad, *, Nb, H, WC):
    x = x_ref[...]                                            # (Nb, H, WC) f32

    zero_row = jnp.zeros((Nb, 1, WC), jnp.float32)
    # Re-zero only the 1-row halos each step; the interior is fully
    # overwritten below, so no full-buffer zeroing pass is needed.
    xpad[:, 0:1, :] = zero_row
    xpad[:, H + 1:H + 2, :] = zero_row
    ypad[:, 0:1, :] = zero_row
    ypad[:, H + 1:H + 2, :] = zero_row

    xpad[:, 1:H + 1, :] = x

    def conv(pad_ref, w_ref, b_ref):
        src = pad_ref[...]                                    # (Nb, H+2, WC) f32
        acc = None
        for dy in range(3):                                   # 3 banded matmuls, K = N = WC
            lhs = src[:, dy:dy + H, :].reshape(Nb * H, WC).astype(jnp.bfloat16)
            term = jnp.dot(lhs, w_ref[dy], preferred_element_type=jnp.float32)
            acc = term if acc is None else acc + term
        return acc + b_ref[...]                               # (Nb*H, WC) f32

    # conv1 + ReLU
    out1 = jnp.maximum(conv(xpad, w1_ref, b1_ref), 0.0)
    ypad[:, 1:H + 1, :] = out1.reshape(Nb, H, WC)

    # conv2 + residual + ReLU, stored in the lane-dense (Nb, H, W*C) layout.
    out2 = conv(ypad, w2_ref, b2_ref) + x.reshape(Nb * H, WC)
    o_ref[...] = jnp.maximum(out2, 0.0).reshape(Nb, H, WC)


def residual_conv_block(x_nchw, w1, b1, w2, b2, *, images_per_step=1):
    """x_nchw: (N, C, H, W) f32. w*: (3,3,C,C) HWIO, b*: (C,). Returns NCHW."""
    N, C, H, W = x_nchw.shape
    WC = W * C
    Nb = images_per_step
    assert N % Nb == 0, "images_per_step must divide the batch size"

    # Boundary layout plumbing (pure XLA): NCHW -> NHWC -> (N, H, W*C).
    x_rows = jnp.transpose(x_nchw, (0, 2, 3, 1)).reshape(N, H, WC)
    x_rows = x_rows.astype(jnp.float32)

    w1b = _band_weights(w1.astype(jnp.float32), W).astype(jnp.bfloat16)
    w2b = _band_weights(w2.astype(jnp.float32), W).astype(jnp.bfloat16)
    b1r = jnp.tile(b1.astype(jnp.float32), (W,)).reshape(1, WC)
    b2r = jnp.tile(b2.astype(jnp.float32), (W,)).reshape(1, WC)

    kernel = functools.partial(_residual_conv_block_kernel, Nb=Nb, H=H, WC=WC)

    out_rows = pl.pallas_call(
        kernel,
        out_shape=jax.ShapeDtypeStruct((N, H, WC), jnp.float32),
        grid_spec=pltpu.PrefetchScalarGridSpec(
            num_scalar_prefetch=0,
            grid=(N // Nb,),
            in_specs=[
                pl.BlockSpec((Nb, H, WC), lambda n: (n, 0, 0)),
                pl.BlockSpec((3, WC, WC), lambda n: (0, 0, 0)),
                pl.BlockSpec((1, WC), lambda n: (0, 0)),
                pl.BlockSpec((3, WC, WC), lambda n: (0, 0, 0)),
                pl.BlockSpec((1, WC), lambda n: (0, 0)),
            ],
            out_specs=pl.BlockSpec((Nb, H, WC), lambda n: (n, 0, 0)),
            scratch_shapes=[
                pltpu.VMEM((Nb, H + 2, WC), jnp.float32),   # H-padded input
                pltpu.VMEM((Nb, H + 2, WC), jnp.float32),   # H-padded conv1 out
            ],
        ),
        compiler_params=pltpu.CompilerParams(
            dimension_semantics=("parallel",)),
    )(x_rows, w1b, b1r, w2b, b2r)

    return jnp.transpose(out_rows.reshape(N, H, W, C), (0, 3, 1, 2))


def _reference(x_nchw, w1, b1, w2, b2):
    """Pure-JAX f32 reference mirroring the PyTorch module."""
    x_nhwc = jnp.transpose(x_nchw, (0, 2, 3, 1))
    dn = ("NHWC", "HWIO", "NHWC")
    c1 = lax.conv_general_dilated(x_nhwc, w1, (1, 1), "SAME",
                                  dimension_numbers=dn) + b1
    c1 = jnp.maximum(c1, 0.0)
    c2 = lax.conv_general_dilated(c1, w2, (1, 1), "SAME",
                                  dimension_numbers=dn) + b2
    out = jnp.maximum(c2 + x_nhwc, 0.0)
    return jnp.transpose(out, (0, 3, 1, 2))


if __name__ == "__main__":
    key = jax.random.PRNGKey(0)
    N, C, H, W = 2, 4, 16, 16
    kx, kw1, kb1, kw2, kb2 = jax.random.split(key, 5)

    x = jax.random.normal(kx, (N, C, H, W), jnp.float32)
    # Deterministic params (shapes of nn.Conv2d(C, C, 3, padding=1)), stored
    # directly in (kH, kW, C_in, C_out) layout.
    scale = 1.0 / (C * 3 * 3) ** 0.5
    w1 = jax.random.uniform(kw1, (3, 3, C, C), jnp.float32, -scale, scale)
    b1 = jax.random.uniform(kb1, (C,), jnp.float32, -scale, scale)
    w2 = jax.random.uniform(kw2, (3, 3, C, C), jnp.float32, -scale, scale)
    b2 = jax.random.uniform(kb2, (C,), jnp.float32, -scale, scale)

    out = jax.jit(residual_conv_block)(x, w1, b1, w2, b2)
    out = jax.block_until_ready(out)

    ref = _reference(x, w1, b1, w2, b2)
    assert out.shape == (N, C, H, W)
    # bf16 matmul inputs (f32 accumulation) -> loosened tolerance vs f32 ref.
    assert jnp.allclose(out, ref, atol=5e-2, rtol=5e-2), "mismatch vs reference"
    print("KERNEL_OK")
</pallas_src>

<mosaic_0001>
module attributes {stable_mosaic.version = 11 : i64} {
  func.func @_residual_conv_block_kernel(%arg0: i32, %arg1: memref<1x16x64xf32, #tpu.memory_space<vmem>>, %arg2: memref<3x64x64xbf16, #tpu.memory_space<vmem>>, %arg3: memref<1x64xf32, #tpu.memory_space<vmem>>, %arg4: memref<3x64x64xbf16, #tpu.memory_space<vmem>>, %arg5: memref<1x64xf32, #tpu.memory_space<vmem>>, %arg6: memref<1x16x64xf32, #tpu.memory_space<vmem>>, %arg7: memref<1x18x64xf32, #tpu.memory_space<vmem>>, %arg8: memref<1x18x64xf32, #tpu.memory_space<vmem>>) attributes {dimension_semantics = [#tpu.dimension_semantics<parallel>], iteration_bounds = array<i64: 2>, scalar_prefetch = 0 : i64, scratch_operands = 2 : i64, tpu.core_type = #tpu.core_type<tc>, window_params = [{transform_indices = @transform_0, window_bounds = array<i64: 1, 16, 64>}, {pipeline_mode = #tpu.pipeline_mode<synchronous>, transform_indices = @transform_1, window_bounds = array<i64: 3, 64, 64>}, {pipeline_mode = #tpu.pipeline_mode<synchronous>, transform_indices = @transform_2, window_bounds = array<i64: 1, 64>}, {pipeline_mode = #tpu.pipeline_mode<synchronous>, transform_indices = @transform_3, window_bounds = array<i64: 3, 64, 64>}, {pipeline_mode = #tpu.pipeline_mode<synchronous>, transform_indices = @transform_4, window_bounds = array<i64: 1, 64>}, {transform_indices = @transform_5, window_bounds = array<i64: 1, 16, 64>}]} {
    %c0 = arith.constant 0 : index
    %c0_0 = arith.constant 0 : index
    %c0_1 = arith.constant 0 : index
    %0 = vector.load %arg1[%c0, %c0_0, %c0_1] : memref<1x16x64xf32, #tpu.memory_space<vmem>>, vector<1x16x64xf32>
    %cst = arith.constant 0.000000e+00 : f32
    %1 = vector.broadcast %cst : f32 to vector<1x1x64xf32>
    %c0_2 = arith.constant 0 : index
    %c0_3 = arith.constant 0 : index
    %c0_4 = arith.constant 0 : index
    %2 = vector.load %arg7[%c0_2, %c0_3, %c0_4] : memref<1x18x64xf32, #tpu.memory_space<vmem>>, vector<1x1x64xf32>
    tpu.vector_store %arg7[%c0_2, %c0_3, %c0_4], %1 {strides = array<i32>} : memref<1x18x64xf32, #tpu.memory_space<vmem>>, vector<1x1x64xf32>,
    %c0_5 = arith.constant 0 : index
    %c17 = arith.constant 17 : index
    %c0_6 = arith.constant 0 : index
    %3 = vector.load %arg7[%c0_5, %c17, %c0_6] : memref<1x18x64xf32, #tpu.memory_space<vmem>>, vector<1x1x64xf32>
    tpu.vector_store %arg7[%c0_5, %c17, %c0_6], %1 {strides = array<i32>} : memref<1x18x64xf32, #tpu.memory_space<vmem>>, vector<1x1x64xf32>,
    %c0_7 = arith.constant 0 : index
    %c0_8 = arith.constant 0 : index
    %c0_9 = arith.constant 0 : index
    %4 = vector.load %arg8[%c0_7, %c0_8, %c0_9] : memref<1x18x64xf32, #tpu.memory_space<vmem>>, vector<1x1x64xf32>
    tpu.vector_store %arg8[%c0_7, %c0_8, %c0_9], %1 {strides = array<i32>} : memref<1x18x64xf32, #tpu.memory_space<vmem>>, vector<1x1x64xf32>,
    %c0_10 = arith.constant 0 : index
    %c17_11 = arith.constant 17 : index
    %c0_12 = arith.constant 0 : index
    %5 = vector.load %arg8[%c0_10, %c17_11, %c0_12] : memref<1x18x64xf32, #tpu.memory_space<vmem>>, vector<1x1x64xf32>
    tpu.vector_store %arg8[%c0_10, %c17_11, %c0_12], %1 {strides = array<i32>} : memref<1x18x64xf32, #tpu.memory_space<vmem>>, vector<1x1x64xf32>,
    %c0_13 = arith.constant 0 : index
    %c1 = arith.constant 1 : index
    %c0_14 = arith.constant 0 : index
    %6 = vector.load %arg7[%c0_13, %c1, %c0_14] : memref<1x18x64xf32, #tpu.memory_space<vmem>>, vector<1x16x64xf32>
    tpu.vector_store %arg7[%c0_13, %c1, %c0_14], %0 {strides = array<i32>} : memref<1x18x64xf32, #tpu.memory_space<vmem>>, vector<1x16x64xf32>,
    %c0_15 = arith.constant 0 : index
    %c0_16 = arith.constant 0 : index
    %c0_17 = arith.constant 0 : index
    %7 = vector.load %arg7[%c0_15, %c0_16, %c0_17] : memref<1x18x64xf32, #tpu.memory_space<vmem>>, vector<1x18x64xf32>
    %8 = vector.extract_strided_slice %7 {offsets = [0, 0, 0], sizes = [1, 16, 64], strides = [1, 1, 1]} : vector<1x18x64xf32> to vector<1x16x64xf32>
    %9 = vector.shape_cast %8 : vector<1x16x64xf32> to vector<16x64xf32>
    %10 = arith.truncf %9 : vector<16x64xf32> to vector<16x64xbf16>
    %c0_18 = arith.constant 0 : index
    %c0_19 = arith.constant 0 : index
    %c0_20 = arith.constant 0 : index
    %11 = vector.load %arg2[%c0_18, %c0_19, %c0_20] : memref<3x64x64xbf16, #tpu.memory_space<vmem>>, vector<1x64x64xbf16>
    %12 = vector.shape_cast %11 : vector<1x64x64xbf16> to vector<64x64xbf16>
    %cst_21 = arith.constant dense<0.000000e+00> : vector<16x64xf32>
    %13 = tpu.matmul %10, %12, %cst_21 {dimension_numbers = #tpu.dot_dimension_numbers<[1], [0], [0], [1], [0, 0, 1, 1], [], []>} : vector<16x64xbf16>, vector<64x64xbf16>, vector<16x64xf32> -> vector<16x64xf32>
    %14 = vector.extract_strided_slice %7 {offsets = [0, 1, 0], sizes = [1, 16, 64], strides = [1, 1, 1]} : vector<1x18x64xf32> to vector<1x16x64xf32>
    %15 = vector.shape_cast %14 : vector<1x16x64xf32> to vector<16x64xf32>
    %16 = arith.truncf %15 : vector<16x64xf32> to vector<16x64xbf16>
    %c1_22 = arith.constant 1 : index
    %c0_23 = arith.constant 0 : index
    %c0_24 = arith.constant 0 : index
    %17 = vector.load %arg2[%c1_22, %c0_23, %c0_24] : memref<3x64x64xbf16, #tpu.memory_space<vmem>>, vector<1x64x64xbf16>
    %18 = vector.shape_cast %17 : vector<1x64x64xbf16> to vector<64x64xbf16>
    %cst_25 = arith.constant dense<0.000000e+00> : vector<16x64xf32>
    %19 = tpu.matmul %16, %18, %cst_25 {dimension_numbers = #tpu.dot_dimension_numbers<[1], [0], [0], [1], [0, 0, 1, 1], [], []>} : vector<16x64xbf16>, vector<64x64xbf16>, vector<16x64xf32> -> vector<16x64xf32>
    %20 = arith.addf %13, %19 : vector<16x64xf32>
    %21 = vector.extract_strided_slice %7 {offsets = [0, 2, 0], sizes = [1, 16, 64], strides = [1, 1, 1]} : vector<1x18x64xf32> to vector<1x16x64xf32>
    %22 = vector.shape_cast %21 : vector<1x16x64xf32> to vector<16x64xf32>
    %23 = arith.truncf %22 : vector<16x64xf32> to vector<16x64xbf16>
    %c2 = arith.constant 2 : index
    %c0_26 = arith.constant 0 : index
    %c0_27 = arith.constant 0 : index
    %24 = vector.load %arg2[%c2, %c0_26, %c0_27] : memref<3x64x64xbf16, #tpu.memory_space<vmem>>, vector<1x64x64xbf16>
    %25 = vector.shape_cast %24 : vector<1x64x64xbf16> to vector<64x64xbf16>
    %cst_28 = arith.constant dense<0.000000e+00> : vector<16x64xf32>
    %26 = tpu.matmul %23, %25, %cst_28 {dimension_numbers = #tpu.dot_dimension_numbers<[1], [0], [0], [1], [0, 0, 1, 1], [], []>} : vector<16x64xbf16>, vector<64x64xbf16>, vector<16x64xf32> -> vector<16x64xf32>
    %27 = arith.addf %20, %26 : vector<16x64xf32>
    %c0_29 = arith.constant 0 : index
    %c0_30 = arith.constant 0 : index
    %28 = vector.load %arg3[%c0_29, %c0_30] : memref<1x64xf32, #tpu.memory_space<vmem>>, vector<1x64xf32>
    %29 = vector.broadcast %28 : vector<1x64xf32> to vector<16x64xf32>
    %30 = arith.addf %27, %29 : vector<16x64xf32>
    %cst_31 = arith.constant 0.000000e+00 : f32
    %31 = vector.broadcast %cst_31 : f32 to vector<16x64xf32>
    %32 = arith.maximumf %30, %31 : vector<16x64xf32>
    %33 = vector.shape_cast %32 : vector<16x64xf32> to vector<1x16x64xf32>
    %c0_32 = arith.constant 0 : index
    %c1_33 = arith.constant 1 : index
    %c0_34 = arith.constant 0 : index
    %34 = vector.load %arg8[%c0_32, %c1_33, %c0_34] : memref<1x18x64xf32, #tpu.memory_space<vmem>>, vector<1x16x64xf32>
    tpu.vector_store %arg8[%c0_32, %c1_33, %c0_34], %33 {strides = array<i32>} : memref<1x18x64xf32, #tpu.memory_space<vmem>>, vector<1x16x64xf32>,
    %c0_35 = arith.constant 0 : index
    %c0_36 = arith.constant 0 : index
    %c0_37 = arith.constant 0 : index
    %35 = vector.load %arg8[%c0_35, %c0_36, %c0_37] : memref<1x18x64xf32, #tpu.memory_space<vmem>>, vector<1x18x64xf32>
    %36 = vector.extract_strided_slice %35 {offsets = [0, 0, 0], sizes = [1, 16, 64], strides = [1, 1, 1]} : vector<1x18x64xf32> to vector<1x16x64xf32>
    %37 = vector.shape_cast %36 : vector<1x16x64xf32> to vector<16x64xf32>
    %38 = arith.truncf %37 : vector<16x64xf32> to vector<16x64xbf16>
    %c0_38 = arith.constant 0 : index
    %c0_39 = arith.constant 0 : index
    %c0_40 = arith.constant 0 : index
    %39 = vector.load %arg4[%c0_38, %c0_39, %c0_40] : memref<3x64x64xbf16, #tpu.memory_space<vmem>>, vector<1x64x64xbf16>
    %40 = vector.shape_cast %39 : vector<1x64x64xbf16> to vector<64x64xbf16>
    %cst_41 = arith.constant dense<0.000000e+00> : vector<16x64xf32>
    %41 = tpu.matmul %38, %40, %cst_41 {dimension_numbers = #tpu.dot_dimension_numbers<[1], [0], [0], [1], [0, 0, 1, 1], [], []>} : vector<16x64xbf16>, vector<64x64xbf16>, vector<16x64xf32> -> vector<16x64xf32>
    %42 = vector.extract_strided_slice %35 {offsets = [0, 1, 0], sizes = [1, 16, 64], strides = [1, 1, 1]} : vector<1x18x64xf32> to vector<1x16x64xf32>
    %43 = vector.shape_cast %42 : vector<1x16x64xf32> to vector<16x64xf32>
    %44 = arith.truncf %43 : vector<16x64xf32> to vector<16x64xbf16>
    %c1_42 = arith.constant 1 : index
    %c0_43 = arith.constant 0 : index
    %c0_44 = arith.constant 0 : index
    %45 = vector.load %arg4[%c1_42, %c0_43, %c0_44] : memref<3x64x64xbf16, #tpu.memory_space<vmem>>, vector<1x64x64xbf16>
    %46 = vector.shape_cast %45 : vector<1x64x64xbf16> to vector<64x64xbf16>
    %cst_45 = arith.constant dense<0.000000e+00> : vector<16x64xf32>
    %47 = tpu.matmul %44, %46, %cst_45 {dimension_numbers = #tpu.dot_dimension_numbers<[1], [0], [0], [1], [0, 0, 1, 1], [], []>} : vector<16x64xbf16>, vector<64x64xbf16>, vector<16x64xf32> -> vector<16x64xf32>
    %48 = arith.addf %41, %47 : vector<16x64xf32>
    %49 = vector.extract_strided_slice %35 {offsets = [0, 2, 0], sizes = [1, 16, 64], strides = [1, 1, 1]} : vector<1x18x64xf32> to vector<1x16x64xf32>
    %50 = vector.shape_cast %49 : vector<1x16x64xf32> to vector<16x64xf32>
    %51 = arith.truncf %50 : vector<16x64xf32> to vector<16x64xbf16>
    %c2_46 = arith.constant 2 : index
    %c0_47 = arith.constant 0 : index
    %c0_48 = arith.constant 0 : index
    %52 = vector.load %arg4[%c2_46, %c0_47, %c0_48] : memref<3x64x64xbf16, #tpu.memory_space<vmem>>, vector<1x64x64xbf16>
    %53 = vector.shape_cast %52 : vector<1x64x64xbf16> to vector<64x64xbf16>
    %cst_49 = arith.constant dense<0.000000e+00> : vector<16x64xf32>
    %54 = tpu.matmul %51, %53, %cst_49 {dimension_numbers = #tpu.dot_dimension_numbers<[1], [0], [0], [1], [0, 0, 1, 1], [], []>} : vector<16x64xbf16>, vector<64x64xbf16>, vector<16x64xf32> -> vector<16x64xf32>
    %55 = arith.addf %48, %54 : vector<16x64xf32>
    %c0_50 = arith.constant 0 : index
    %c0_51 = arith.constant 0 : index
    %56 = vector.load %arg5[%c0_50, %c0_51] : memref<1x64xf32, #tpu.memory_space<vmem>>, vector<1x64xf32>
    %57 = vector.broadcast %56 : vector<1x64xf32> to vector<16x64xf32>
    %58 = arith.addf %55, %57 : vector<16x64xf32>
    %59 = vector.shape_cast %0 : vector<1x16x64xf32> to vector<16x64xf32>
    %60 = arith.addf %58, %59 : vector<16x64xf32>
    %cst_52 = arith.constant 0.000000e+00 : f32
    %61 = vector.broadcast %cst_52 : f32 to vector<16x64xf32>
    %62 = arith.maximumf %60, %61 : vector<16x64xf32>
    %63 = vector.shape_cast %62 : vector<16x64xf32> to vector<1x16x64xf32>
    %c0_53 = arith.constant 0 : index
    %c0_54 = arith.constant 0 : index
    %c0_55 = arith.constant 0 : index
    %64 = vector.load %arg6[%c0_53, %c0_54, %c0_55] : memref<1x16x64xf32, #tpu.memory_space<vmem>>, vector<1x16x64xf32>
    tpu.vector_store %arg6[%c0_53, %c0_54, %c0_55], %63 {strides = array<i32>} : memref<1x16x64xf32, #tpu.memory_space<vmem>>, vector<1x16x64xf32>,
    return
  }
  func.func @transform_0(%arg0: i32) -> (i32, i32, i32) {
    %c0_i32 = arith.constant 0 : i32
    %c0_i32_0 = arith.constant 0 : i32
    %c0_i32_1 = arith.constant 0 : i32
    return %arg0, %c0_i32, %c0_i32_0 : i32, i32, i32
  }
  func.func @transform_1(%arg0: i32) -> (i32, i32, i32) {
    %c0_i32 = arith.constant 0 : i32
    %c0_i32_0 = arith.constant 0 : i32
    %c0_i32_1 = arith.constant 0 : i32
    %c0_i32_2 = arith.constant 0 : i32
    return %c0_i32, %c0_i32_0, %c0_i32_1 : i32, i32, i32
  }
  func.func @transform_2(%arg0: i32) -> (i32, i32) {
    %c0_i32 = arith.constant 0 : i32
    %c0_i32_0 = arith.constant 0 : i32
    %c0_i32_1 = arith.constant 0 : i32
    return %c0_i32, %c0_i32_0 : i32, i32
  }
  func.func @transform_3(%arg0: i32) -> (i32, i32, i32) {
    %c0_i32 = arith.constant 0 : i32
    %c0_i32_0 = arith.constant 0 : i32
    %c0_i32_1 = arith.constant 0 : i32
    %c0_i32_2 = arith.constant 0 : i32
    return %c0_i32, %c0_i32_0, %c0_i32_1 : i32, i32, i32
  }
  func.func @transform_4(%arg0: i32) -> (i32, i32) {
    %c0_i32 = arith.constant 0 : i32
    %c0_i32_0 = arith.constant 0 : i32
    %c0_i32_1 = arith.constant 0 : i32
    return %c0_i32, %c0_i32_0 : i32, i32
  }
  func.func @transform_5(%arg0: i32) -> (i32, i32, i32) {
    %c0_i32 = arith.constant 0 : i32
    %c0_i32_0 = arith.constant 0 : i32
    %c0_i32_1 = arith.constant 0 : i32
    return %arg0, %c0_i32, %c0_i32_0 : i32, i32, i32
  }
}

</mosaic_0001>

<llo_original>
// kernel: tile.13
$region0: #{tile.13}
  #allocation0 [shape = 's32[1]{0}', space=sflag, size = 0x4, scoped, tag = 'scoped memory for tile.13']
  %s0 = inlined_call_operand.vmem [shape: f32[4], index: 0, kind: input, shape index: {}]
  %s1 = inlined_call_operand.vmem [shape: f32[16,4], index: 1, kind: output, shape index: {}]
  // Predicated region
  $region2: #{tile.13} parent=0 // pred_check
    _
  $region3: #{tile.13} parent=0 // pred_check_branch
    %3 = sbr.rel (0) target = $region5
  $region4: #{tile.13} parent=0 // pred_region
    _
  $region5: #{tile.13} parent=0 // pred_fallthru
    _
  %v4 = vld [vmem:[%s0] ss:$0 sm:$0xff]
  %5 = vst [vmem:[%s1] sm:$0xff] %v4
  %s6 = scalar_lea.vmem %s1, 8
  %7 = vst [vmem:[%s6] sm:$0xff] %v4

// kernel: tile.14
$region0: #{tile.14}
  %s0 = inlined_call_operand.vmem [shape: f32[16,4], index: 0, kind: input, shape index: {}]
  %s1 = inlined_call_operand.vmem [shape: f32[1,64], index: 1, kind: output, shape index: {}]
  $region1: #{tile.14} parent=0
    #allocation0 [shape = 'u8[4096]{0}', space=vmem, size = 0x1000, scoped, tag = 'scoped mem for output reshape']
    %v2 = vld [vmem:[%s0] sm:$0x1]
    %vm3 = vcmask 31744
    %4 = vst.msk [vmem:[#allocation0] sm:$0x1] %vm3, %v2
    %s5 = scalar_lea.vmem %s0, 15
    %v6 = vld [vmem:[%s5] sm:$0x1]
    %7 = vrot.lane.b32.xlu0 %v6, 60
    %v8 = vpop.permute.xlu0 %7
    %vm9 = vcmask 523744
    %10 = vst.msk [vmem:[#allocation0] sm:$0x1] %vm9, %v8
    %s11 = scalar_lea.vmem %s0, 14
    %v12 = vld [vmem:[%s11] sm:$0x1]
    %13 = vrot.lane.b32.xlu0 %v12, 56
    %v14 = vpop.permute.xlu0 %13
    %vm15 = vcmask 490944
    %16 = vst.msk [vmem:[#allocation0] sm:$0x1] %vm15, %v14
    %s17 = scalar_lea.vmem %s0, 13
    %v18 = vld [vmem:[%s17] sm:$0x1]
    %19 = vrot.lane.b32.xlu0 %v18, 52
    %v20 = vpop.permute.xlu0 %19
    %vm21 = vcmask 458144
    %22 = vst.msk [vmem:[#allocation0] sm:$0x1] %vm21, %v20
    %s23 = scalar_lea.vmem %s0, 12
    %v24 = vld [vmem:[%s23] sm:$0x1]
    %25 = vrot.lane.b32.xlu0 %v24, 48
    %v26 = vpop.permute.xlu0 %25
    %vm27 = vcmask 425344
    %28 = vst.msk [vmem:[#allocation0] sm:$0x1] %vm27, %v26
    %s29 = scalar_lea.vmem %s0, 11
    %v30 = vld [vmem:[%s29] sm:$0x1]
    %31 = vrot.lane.b32.xlu0 %v30, 44
    %v32 = vpop.permute.xlu0 %31
    %vm33 = vcmask 392544
    %34 = vst.msk [vmem:[#allocation0] sm:$0x1] %vm33, %v32
    %s35 = scalar_lea.vmem %s0, 10
    %v36 = vld [vmem:[%s35] sm:$0x1]
    %37 = vrot.lane.b32.xlu0 %v36, 40
    %v38 = vpop.permute.xlu0 %37
    %vm39 = vcmask 359744
    %40 = vst.msk [vmem:[#allocation0] sm:$0x1] %vm39, %v38
    %s41 = scalar_lea.vmem %s0, 9
    %v42 = vld [vmem:[%s41] sm:$0x1]
    %43 = vrot.lane.b32.xlu0 %v42, 36
    %v44 = vpop.permute.xlu0 %43
    %vm45 = vcmask 326944
    %46 = vst.msk [vmem:[#allocation0] sm:$0x1] %vm45, %v44
    %s47 = scalar_lea.vmem %s0, 8
    %v48 = vld [vmem:[%s47] sm:$0x1]
    %49 = vrot.lane.b32.xlu0 %v48, 32
    %v50 = vpop.permute.xlu0 %49
    %vm51 = vcmask 294144
    %52 = vst.msk [vmem:[#allocation0] sm:$0x1] %vm51, %v50
    %s53 = scalar_lea.vmem %s0, 7
    %v54 = vld [vmem:[%s53] sm:$0x1]
    %55 = vrot.lane.b32.xlu0 %v54, 28
    %v56 = vpop.permute.xlu0 %55
    %vm57 = vcmask 261344
    %58 = vst.msk [vmem:[#allocation0] sm:$0x1] %vm57, %v56
    %s59 = scalar_lea.vmem %s0, 6
    %v60 = vld [vmem:[%s59] sm:$0x1]
    %61 = vrot.lane.b32.xlu0 %v60, 24
    %v62 = vpop.permute.xlu0 %61
    %vm63 = vcmask 228544
    %64 = vst.msk [vmem:[#allocation0] sm:$0x1] %vm63, %v62
    %s65 = scalar_lea.vmem %s0, 5
    %v66 = vld [vmem:[%s65] sm:$0x1]
    %67 = vrot.lane.b32.xlu0 %v66, 20
    %v68 = vpop.permute.xlu0 %67
    %vm69 = vcmask 195744
    %70 = vst.msk [vmem:[#allocation0] sm:$0x1] %vm69, %v68
    %s71 = scalar_lea.vmem %s0, 4
    %v72 = vld [vmem:[%s71] sm:$0x1]
    %73 = vrot.lane.b32.xlu0 %v72, 16
    %v74 = vpop.permute.xlu0 %73
    %vm75 = vcmask 162944
    %76 = vst.msk [vmem:[#allocation0] sm:$0x1] %vm75, %v74
    %s77 = scalar_lea.vmem %s0, 3
    %v78 = vld [vmem:[%s77] sm:$0x1]
    %79 = vrot.lane.b32.xlu0 %v78, 12
    %v80 = vpop.permute.xlu0 %79
    %vm81 = vcmask 130144
    %82 = vst.msk [vmem:[#allocation0] sm:$0x1] %vm81, %v80
    %s83 = scalar_lea.vmem %s0, 2
    %v84 = vld [vmem:[%s83] sm:$0x1]
    %85 = vrot.lane.b32.xlu0 %v84, 8
    %v86 = vpop.permute.xlu0 %85
    %vm87 = vcmask 97344
    %88 = vst.msk [vmem:[#allocation0] sm:$0x1] %vm87, %v86
    %s89 = scalar_lea.vmem %s0, 1
    %v90 = vld [vmem:[%s89] sm:$0x1]
    %91 = vrot.lane.b32.xlu0 %v90, 4
    %v92 = vpop.permute.xlu0 %91
    %vm93 = vcmask 64544
    %94 = vst.msk [vmem:[#allocation0] sm:$0x1] %vm93, %v92
    %s96 = sshllo.u32 0, 1
    %v98 = vld [vmem:[#allocation0] sm:%s96]
    %s99 = sshllo.u32 0, 1
    %100 = vst [vmem:[%s1] sm:%s99] %v98

// kernel: residual_conv_block.1
$region0: #{residual_conv_block.1}
  #allocation0 [shape = 'u32[]', space=smem, size = 0x4, offset = 0x4, fixed_abs, tag = 'smem constant byte address 0x4 - core index']
  #allocation1 [shape = 'u32[144,128]{1,0:T(1,128)}', space=vmem, size = 0x12000, scoped, tag = 'internal scratch']
  #allocation2 [shape = 'f32[1,18,64]{2,1,0:T(8,128)}', space=vmem, size = 0x3000, scoped, tag = 'scratch operand']
  #allocation3 [shape = 'f32[1,18,64]{2,1,0:T(8,128)}', space=vmem, size = 0x3000, scoped, tag = 'scratch operand']
  %s0 = inlined_call_operand.vmem [shape: f32[2,16,64], index: 0, kind: input, shape index: {}]
  %s1 = inlined_call_operand.vmem [shape: bf16[3,64,64], index: 1, kind: input, shape index: {}]
  %s2 = inlined_call_operand.vmem [shape: f32[1,64], index: 2, kind: input, shape index: {}]
  %s3 = inlined_call_operand.vmem [shape: bf16[3,64,64], index: 3, kind: input, shape index: {}]
  %s4 = inlined_call_operand.vmem [shape: f32[1,64], index: 4, kind: input, shape index: {}]
  %s5 = inlined_call_operand.vmem [shape: f32[2,16,64], index: 5, kind: output, shape index: {}]
  %s6 = sld [smem:[#allocation0]]
  $region53: #{residual_conv_block.1} parent=0
    _
  %s8 = ssub.s32 1, %s6
  %s9 = scalar_select 0, %s8, %s6
  loop: start=0, step=1, limit=4
  $region2: #{residual_conv_block.1} parent=0 // loop_pre_header
    _
  $region3: #{residual_conv_block.1} parent=0 // loop_header
    %s11 = sphi 0, %s15
    %p12 = scmp.ge.s32.totalorder %s11, 4
    %s21 = sphi 0, %s23
    %s24 = sphi 0, %s21
    %s25 = sphi 0, %s24
    %s41 = sphi 0, %s25
    %s45 = sphi 0, %s45
    %s47 = sphi 0, %s45
    %s48 = sphi 0, %s47
    %s62 = sphi 0, %s48
    %s66 = sphi 0, %s66
    %s68 = sphi 0, %s66
    %s69 = sphi 0, %s68
    %s83 = sphi 0, %s69
    %s87 = sphi 0, %s87
    %s89 = sphi 0, %s87
    %s90 = sphi 0, %s89
    %s104 = sphi 0, %s90
    %s108 = sphi 0, %s108
    %s110 = sphi 0, %s108
    %s111 = sphi 0, %s110
    %s125 = sphi 0, %s111
    %s131 = sphi 0, %s133
    %s134 = sphi 0, %s131
    %s135 = sphi 0, %s134
    %s151 = sphi 0, %s135
  $region4: #{residual_conv_block.1} parent=0 // loop_header_branch
    %14 = sbr.rel (%p12) target = $region8
  $region5: #{residual_conv_block.1} parent=0 // loop_body
    %s16 = ssub.s32 %s11, 1
    %s17 = ssub.s32 %s11, 2
    %s18 = sadd.s32 %s11, 1
    %s19 = ssub.s32 %s11, %s18
    %p20 = scmp.eq.s32.totalorder %s19, 0
    %s22 = sadd.s32 %s21, 1
    %s23 = scalar_select %p20, %s21, %s22
    %p26 = pneg %p20
    %p27 = scmp.eq.s32.totalorder %s11, 1
    %p28 = por %p26, %p27
    %p29 = scmp.ne.s32.totalorder %s21, %s24
    %p30 = scmp.eq.s32.totalorder %s11, 0
    %p31 = por %p29, %p30
    %p32 = scmp.ne.s32.totalorder %s21, %s24
    %p33 = scmp.eq.s32.totalorder %s16, 1
    %p34 = por %p32, %p33
    %p35 = scmp.ne.s32.totalorder %s24, %s25
    %p36 = scmp.eq.s32.totalorder %s16, 0
    %p37 = por %p35, %p36
    %p38 = scmp.ne.s32.totalorder %s24, %s25
    %p39 = scmp.eq.s32.totalorder %s17, 1
    %p40 = por %p38, %p39
    %p42 = scmp.ne.s32.totalorder %s25, %s41
    %p43 = scmp.eq.s32.totalorder %s17, 0
    %p44 = por %p42, %p43
    %s46 = sadd.s32 %s45, 1
    %p49 = scmp.eq.s32.totalorder %s11, 1
    %p50 = scmp.ne.s32.totalorder %s45, %s47
    %p51 = scmp.eq.s32.totalorder %s11, 0
    %p52 = por %p50, %p51
    %p53 = scmp.ne.s32.totalorder %s45, %s47
    %p54 = scmp.eq.s32.totalorder %s16, 1
    %p55 = por %p53, %p54
    %p56 = scmp.ne.s32.totalorder %s47, %s48
    %p57 = scmp.eq.s32.totalorder %s16, 0
    %p58 = por %p56, %p57
    %p59 = scmp.ne.s32.totalorder %s47, %s48
    %p60 = scmp.eq.s32.totalorder %s17, 1
    %p61 = por %p59, %p60
    %p63 = scmp.ne.s32.totalorder %s48, %s62
    %p64 = scmp.eq.s32.totalorder %s17, 0
    %p65 = por %p63, %p64
    %s67 = sadd.s32 %s66, 1
    %p70 = scmp.eq.s32.totalorder %s11, 1
    %p71 = scmp.ne.s32.totalorder %s66, %s68
    %p72 = scmp.eq.s32.totalorder %s11, 0
    %p73 = por %p71, %p72
    %p74 = scmp.ne.s32.totalorder %s66, %s68
    %p75 = scmp.eq.s32.totalorder %s16, 1
    %p76 = por %p74, %p75
    %p77 = scmp.ne.s32.totalorder %s68, %s69
    %p78 = scmp.eq.s32.totalorder %s16, 0
    %p79 = por %p77, %p78
    %p80 = scmp.ne.s32.totalorder %s68, %s69
    %p81 = scmp.eq.s32.totalorder %s17, 1
    %p82 = por %p80, %p81
    %p84 = scmp.ne.s32.totalorder %s69, %s83
    %p85 = scmp.eq.s32.totalorder %s17, 0
    %p86 = por %p84, %p85
    %s88 = sadd.s32 %s87, 1
    %p91 = scmp.eq.s32.totalorder %s11, 1
    %p92 = scmp.ne.s32.totalorder %s87, %s89
    %p93 = scmp.eq.s32.totalorder %s11, 0
    %p94 = por %p92, %p93
    %p95 = scmp.ne.s32.totalorder %s87, %s89
    %p96 = scmp.eq.s32.totalorder %s16, 1
    %p97 = por %p95, %p96
    %p98 = scmp.ne.s32.totalorder %s89, %s90
    %p99 = scmp.eq.s32.totalorder %s16, 0
    %p100 = por %p98, %p99
    %p101 = scmp.ne.s32.totalorder %s89, %s90
    %p102 = scmp.eq.s32.totalorder %s17, 1
    %p103 = por %p101, %p102
    %p105 = scmp.ne.s32.totalorder %s90, %s104
    %p106 = scmp.eq.s32.totalorder %s17, 0
    %p107 = por %p105, %p106
    %s109 = sadd.s32 %s108, 1
    %p112 = scmp.eq.s32.totalorder %s11, 1
    %p113 = scmp.ne.s32.totalorder %s108, %s110
    %p114 = scmp.eq.s32.totalorder %s11, 0
    %p115 = por %p113, %p114
    %p116 = scmp.ne.s32.totalorder %s108, %s110
    %p117 = scmp.eq.s32.totalorder %s16, 1
    %p118 = por %p116, %p117
    %p119 = scmp.ne.s32.totalorder %s110, %s111
    %p120 = scmp.eq.s32.totalorder %s16, 0
    %p121 = por %p119, %p120
    %p122 = scmp.ne.s32.totalorder %s110, %s111
    %p123 = scmp.eq.s32.totalorder %s17, 1
    %p124 = por %p122, %p123
    %p126 = scmp.ne.s32.totalorder %s111, %s125
    %p127 = scmp.eq.s32.totalorder %s17, 0
    %p128 = por %p126, %p127
    %s129 = ssub.s32 %s11, %s18
    %p130 = scmp.eq.s32.totalorder %s129, 0
    %s132 = sadd.s32 %s131, 1
    %s133 = scalar_select %p130, %s131, %s132
    %p136 = pneg %p130
    %p137 = scmp.eq.s32.totalorder %s11, 1
    %p138 = por %p136, %p137
    %p139 = scmp.ne.s32.totalorder %s131, %s134
    %p140 = scmp.eq.s32.totalorder %s11, 0
    %p141 = por %p139, %p140
    %p142 = scmp.ne.s32.totalorder %s131, %s134
    %p143 = scmp.eq.s32.totalorder %s16, 1
    %p144 = por %p142, %p143
    %p145 = scmp.ne.s32.totalorder %s134, %s135
    %p146 = scmp.eq.s32.totalorder %s16, 0
    %p147 = por %p145, %p146
    %p148 = scmp.ne.s32.totalorder %s134, %s135
    %p149 = scmp.eq.s32.totalorder %s17, 1
    %p150 = por %p148, %p149
    %p152 = scmp.ne.s32.totalorder %s135, %s151
    %p153 = scmp.eq.s32.totalorder %s17, 0
    %p154 = por %p152, %p153
    %p155 = scmp.le.s32.totalorder 1, %s11
    %p156 = scmp.lt.s32.totalorder %s11, 3
    %p157 = pnand %p155, %p156
    %p158 = pneg %p157
    // Predicated region
    $region9: #{residual_conv_block.1} parent=5 // pred_check
      _
    $region10: #{residual_conv_block.1} parent=5 // pred_check_branch
      %160 = sbr.rel (%p157) target = $region12
    $region11: #{residual_conv_block.1} parent=5 // pred_region
      %s161 = ssub.s32 %s11, 1
      // Predicated region
      $region13: #{residual_conv_block.1} parent=11 // pred_check
        %p162 = pneg %p58
      $region14: #{residual_conv_block.1} parent=11 // pred_check_branch
        %164 = sbr.rel (%p162) target = $region16
      $region15: #{residual_conv_block.1} parent=11 // pred_region
        _
      $region16: #{residual_conv_block.1} parent=11 // pred_fallthru
        _
      // Predicated region
      $region17: #{residual_conv_block.1} parent=11 // pred_check
        %p165 = pneg %p79
      $region18: #{residual_conv_block.1} parent=11 // pred_check_branch
        %167 = sbr.rel (%p165) target = $region20
      $region19: #{residual_conv_block.1} parent=11 // pred_region
        _
      $region20: #{residual_conv_block.1} parent=11 // pred_fallthru
        _
      // Predicated region
      $region21: #{residual_conv_block.1} parent=11 // pred_check
        %p168 = pneg %p100
      $region22: #{residual_conv_block.1} parent=11 // pred_check_branch
        %170 = sbr.rel (%p168) target = $region24
      $region23: #{residual_conv_block.1} parent=11 // pred_region
        _
      $region24: #{residual_conv_block.1} parent=11 // pred_fallthru
        _
      // Predicated region
      $region25: #{residual_conv_block.1} parent=11 // pred_check
        %p171 = pneg %p121
      $region26: #{residual_conv_block.1} parent=11 // pred_check_branch
        %173 = sbr.rel (%p171) target = $region28
      $region27: #{residual_conv_block.1} parent=11 // pred_region
        _
      $region28: #{residual_conv_block.1} parent=11 // pred_fallthru
        _
    $region12: #{residual_conv_block.1} parent=5 // pred_fallthru
      _
    %p174 = scmp.lt.s32.totalorder %s11, 2
    // Predicated region
    $region29: #{residual_conv_block.1} parent=5 // pred_check
      %p175 = pneg %p174
    $region30: #{residual_conv_block.1} parent=5 // pred_check_branch
      %177 = sbr.rel (%p175) target = $region32
    $region31: #{residual_conv_block.1} parent=5 // pred_region
      // Predicated region
      $region33: #{residual_conv_block.1} parent=31 // pred_check
        %p178 = pneg %p31
      $region34: #{residual_conv_block.1} parent=31 // pred_check_branch
        %180 = sbr.rel (%p178) target = $region36
      $region35: #{residual_conv_block.1} parent=31 // pred_region
        %p181 = scmp.lt.s32.totalorder %s11, 1
        %s182 = scalar_select %p181, %s11, 1
        %s183 = smul.addr %s182, 2
        %s184 = smul.addr %s183, 8
        %s185 = scalar_lea.vmem %s0, %s184
      $region36: #{residual_conv_block.1} parent=31 // pred_fallthru
        _
    $region32: #{residual_conv_block.1} parent=5 // pred_fallthru
      _
    %p186 = scmp.le.s32.totalorder 1, %s11
    %p187 = scmp.lt.s32.totalorder %s11, 3
    %p188 = pnand %p186, %p187
    %p189 = pneg %p188
    // Predicated region
    $region37: #{residual_conv_block.1} parent=5 // pred_check
      _
    $region38: #{residual_conv_block.1} parent=5 // pred_check_branch
      %191 = sbr.rel (%p188) target = $region40
    $region39: #{residual_conv_block.1} parent=5 // pred_region
      %s192 = ssub.s32 %s11, 1
      %p193 = scmp.lt.s32.totalorder %s16, 1
      %s194 = scalar_select %p193, %s16, 1
      %s195 = smul.addr %s194, 2
      %s196 = smul.addr %s195, 8
      %s197 = scalar_lea.vmem %s0, %s196
      %p198 = pneg %p37
      %p199 = pneg %p34
      %p200 = pneg %p58
      %p201 = pneg %p55
      %p202 = pneg %p79
      %p203 = pneg %p76
      %p204 = pneg %p100
      %p205 = pneg %p97
      %p206 = pneg %p121
      %p207 = pneg %p118
      %p208 = pneg %p147
      %p209 = pneg %p144
      %p210 = scmp.lt.s32.totalorder %s16, 1
      %s211 = scalar_select %p210, %s16, 1
      %s212 = smul.addr %s211, 2
      %s213 = smul.addr %s212, 8
      %s214 = scalar_lea.vmem %s5, %s213
      %p215 = scmp.lt.s32.totalorder %s16, 1
      %s216 = scalar_select %p215, %s16, 1
      %s217 = smul.addr %s216, 2
      %s218 = smul.addr %s217, 8
      %s219 = scalar_lea.vmem %s0, %s218
      %p220 = scmp.lt.s32.totalorder %s16, 1
      %s221 = scalar_select %p220, %s16, 1
      %s222 = smul.addr %s221, 2
      %s223 = smul.addr %s222, 8
      %s224 = scalar_lea.vmem %s5, %s223
      %v226 = vld [vmem:[%s219] sm:$0xff]
      %v227 = vld [vmem:[%s219 + $0x8] sm:$0xff]
      %vm228 = vcmask 516096
      %229 = vst.msk [vmem:[#allocation2] sm:$0x1] %vm228, 0.0
      %230 = vst.msk [vmem:[#allocation2 + $0x11] sm:$0x1] %vm228, 0.0
      %231 = vst.msk [vmem:[#allocation3] sm:$0x1] %vm228, 0.0
      %232 = vst.msk [vmem:[#allocation3 + $0x11] sm:$0x1] %vm228, 0.0
      %vm233 = vcmask 523264
      %234 = vst.msk [vmem:[#allocation2 + $0x1] sm:$0xff] %vm233, %v226
      %235 = vst.msk [vmem:[#allocation2 + $0x9] sm:$0xff] %vm233, %v227
      %v236 = vld [vmem:[#allocation2] sm:$0xff]
      %v237 = vld [vmem:[#allocation2 + $0x8] sm:$0xff]
      %v238 = vld [vmem:[#allocation2 + $0x10] sm:$0x3]
      %v239 = vpack.c.bf16 %v237, %v236
      %v240 = vld [vmem:[%s1] sm:$0xf]
      %v241 = vld [vmem:[%s1 + $0x4] sm:$0xf]
      %v242 = vld [vmem:[%s1 + $0x8] sm:$0xf]
      %v243 = vld [vmem:[%s1 + $0xc] sm:$0xf]
      %v244 = vld [vmem:[%s1 + $0x10] sm:$0xf]
      %v245 = vld [vmem:[%s1 + $0x14] sm:$0xf]
      %v246 = vld [vmem:[%s1 + $0x18] sm:$0xf]
      %v247 = vld [vmem:[%s1 + $0x1c] sm:$0xf]
      %v248 = vpack.c.bf16 %v238, %v238
      %s249 = scalar_lea.vmem %s1, 32
      %v250 = vld [vmem:[%s249] sm:$0xf]
      %v251 = vld [vmem:[%s249 + $0x4] sm:$0xf]
      %v252 = vld [vmem:[%s249 + $0x8] sm:$0xf]
      %v253 = vld [vmem:[%s249 + $0xc] sm:$0xf]
      %v254 = vld [vmem:[%s249 + $0x10] sm:$0xf]
      %v255 = vld [vmem:[%s249 + $0x14] sm:$0xf]
      %v256 = vld [vmem:[%s249 + $0x18] sm:$0xf]
      %v257 = vld [vmem:[%s249 + $0x1c] sm:$0xf]
      %vm258 = vsmask.f32 7424
      %v260 = vshrl.u32 %v239, 16
      %v262 = vshll.u32 %v239, 16
      %v264 = vrot.slane %v262, 1
      %v265 = vor.u32 %v260, %v264
      %v267 = vshll.u32 %v248, 16
      %v269 = vrot.slane %v267, 1
      %v270 = vsel %vm258, %v265, %v269
      %v279 = vunpack.c.l.b16 %v250
      %v280 = vunpack.c.l.b16 %v251
      %v281 = vunpack.c.l.b16 %v252
      %v282 = vunpack.c.l.b16 %v253
      %v283 = vunpack.c.l.b16 %v254
      %v284 = vunpack.c.l.b16 %v255
      %v285 = vunpack.c.l.b16 %v256
      %v286 = vunpack.c.l.b16 %v257
      %v287 = vpack.c.b16 %v280, %v279
      %v288 = vpack.c.b16 %v282, %v281
      %v289 = vpack.c.b16 %v284, %v283
      %v290 = vpack.c.b16 %v286, %v285
      %v296 = vsel %vm233, %v270, 0
      %298 = vmatprep.subr.bf16.mxu0 0
      %299 = vmatpush1.bf16.msra.mxu0 %v287
      %300 = vmatprep.subr.bf16.mxu0 0
      %301 = vmatpush1.bf16.msra.mxu0 %v288
      %302 = vmatprep.subr.bf16.mxu0 0
      %303 = vmatpush1.bf16.msra.mxu0 %v289
      %304 = vmatprep.subr.bf16.mxu0 0
      %305 = vmatpush1.bf16.msra.mxu0 %v290
      %306 = vmatprep.subr.bf16.mxu0 0
      %307 = vmatpush1.bf16.msra.mxu0 0
      %308 = vmatprep.subr.bf16.mxu0 0
      %309 = vmatpush1.bf16.msra.mxu0 0
      %310 = vmatprep.subr.bf16.mxu0 0
      %311 = vmatpush1.bf16.msra.mxu0 0
      %312 = vmatprep.subr.bf16.mxu0 0
      %313 = vmatpush1.bf16.msra.mxu0 0
      %314 = vmatprep.subr.bf16.mxu0 0
      %315 = vmatpush1.bf16.msra.mxu0 0
      %316 = vmatprep.subr.bf16.mxu0 0
      %317 = vmatpush1.bf16.msra.mxu0 0
      %318 = vmatprep.subr.bf16.mxu0 0
      %319 = vmatpush1.bf16.msra.mxu0 0
      %320 = vmatprep.subr.bf16.mxu0 0
      %321 = vmatpush1.bf16.msra.mxu0 0
      %322 = vmatprep.subr.bf16.mxu0 0
      %323 = vmatpush1.bf16.msra.mxu0 0
      %324 = vmatprep.subr.bf16.mxu0 0
      %325 = vmatpush1.bf16.msra.mxu0 0
      %326 = vmatprep.subr.bf16.mxu0 0
      %327 = vmatpush1.bf16.msra.mxu0 0
      %328 = vmatprep.subr.bf16.mxu0 0
      %329 = vmatpush1.bf16.msra.mxu0 0
      %330 = vmatprep.mubr.bf16.mxu0 0
      %331 = vmatmul.mubr.bf16.gmra.mrb[0].mxu0 %v296
      %v332 = vpop.f32.mrb[0].mxu0
      %v333 = vadd.f32 0.0, %v332
      %v334 = vpop.f32.mrb[0].mxu0
      %v335 = vpop.f32.mrb[0].mxu0
      %v336 = vadd.f32 0.0, %v335
      %v337 = vpop.f32.mrb[0].mxu0
      %338 = vdwg.mxu0
      %v347 = vunpack.c.l.b16 %v240
      %v348 = vunpack.c.l.b16 %v241
      %v349 = vunpack.c.l.b16 %v242
      %v350 = vunpack.c.l.b16 %v243
      %v351 = vunpack.c.l.b16 %v244
      %v352 = vunpack.c.l.b16 %v245
      %v353 = vunpack.c.l.b16 %v246
      %v354 = vunpack.c.l.b16 %v247
      %v355 = vpack.c.b16 %v348, %v347
      %v356 = vpack.c.b16 %v350, %v349
      %v357 = vpack.c.b16 %v352, %v351
      %v358 = vpack.c.b16 %v354, %v353
      %v363 = vsel %vm233, %v239, 0
      %365 = vmatprep.subr.bf16.mxu0 0
      %366 = vmatpush1.bf16.msra.mxu0 %v355
      %367 = vmatprep.subr.bf16.mxu0 0
      %368 = vmatpush1.bf16.msra.mxu0 %v356
      %369 = vmatprep.subr.bf16.mxu0 0
      %370 = vmatpush1.bf16.msra.mxu0 %v357
      %371 = vmatprep.subr.bf16.mxu0 0
      %372 = vmatpush1.bf16.msra.mxu0 %v358
      %373 = vmatprep.subr.bf16.mxu0 0
      %374 = vmatpush1.bf16.msra.mxu0 0
      %375 = vmatprep.subr.bf16.mxu0 0
      %376 = vmatpush1.bf16.msra.mxu0 0
      %377 = vmatprep.subr.bf16.mxu0 0
      %378 = vmatpush1.bf16.msra.mxu0 0
      %379 = vmatprep.subr.bf16.mxu0 0
      %380 = vmatpush1.bf16.msra.mxu0 0
      %381 = vmatprep.subr.bf16.mxu0 0
      %382 = vmatpush1.bf16.msra.mxu0 0
      %383 = vmatprep.subr.bf16.mxu0 0
      %384 = vmatpush1.bf16.msra.mxu0 0
      %385 = vmatprep.subr.bf16.mxu0 0
      %386 = vmatpush1.bf16.msra.mxu0 0
      %387 = vmatprep.subr.bf16.mxu0 0
      %388 = vmatpush1.bf16.msra.mxu0 0
      %389 = vmatprep.subr.bf16.mxu0 0
      %390 = vmatpush1.bf16.msra.mxu0 0
      %391 = vmatprep.subr.bf16.mxu0 0
      %392 = vmatpush1.bf16.msra.mxu0 0
      %393 = vmatprep.subr.bf16.mxu0 0
      %394 = vmatpush1.bf16.msra.mxu0 0
      %395 = vmatprep.subr.bf16.mxu0 0
      %396 = vmatpush1.bf16.msra.mxu0 0
      %397 = vmatprep.mubr.bf16.mxu0 0
      %398 = vmatmul.mubr.bf16.gmra.mrb[0].mxu0 %v363
      %v399 = vpop.f32.mrb[0].mxu0
      %v400 = vadd.f32 %v333, %v399
      %v401 = vpop.f32.mrb[0].mxu0
      %v402 = vpop.f32.mrb[0].mxu0
      %v403 = vadd.f32 %v336, %v402
      %v404 = vpop.f32.mrb[0].mxu0
      %405 = vdwg.mxu0
      %s406 = scalar_lea.vmem %s1, 64
      %v407 = vld [vmem:[%s406] sm:$0xf]
      %v408 = vld [vmem:[%s406 + $0x4] sm:$0xf]
      %v409 = vld [vmem:[%s406 + $0x8] sm:$0xf]
      %v410 = vld [vmem:[%s406 + $0xc] sm:$0xf]
      %v411 = vld [vmem:[%s406 + $0x10] sm:$0xf]
      %v412 = vld [vmem:[%s406 + $0x14] sm:$0xf]
      %v413 = vld [vmem:[%s406 + $0x18] sm:$0xf]
      %v414 = vld [vmem:[%s406 + $0x1c] sm:$0xf]
      %vm417 = vcmask 1046528
      %v418 = vrot.slane %v239, 1
      %v419 = vrot.slane %v248, 1
      %v420 = vsel %vm417, %v418, %v419
      %v429 = vunpack.c.l.b16 %v407
      %v430 = vunpack.c.l.b16 %v408
      %v431 = vunpack.c.l.b16 %v409
      %v432 = vunpack.c.l.b16 %v410
      %v433 = vunpack.c.l.b16 %v411
      %v434 = vunpack.c.l.b16 %v412
      %v435 = vunpack.c.l.b16 %v413
      %v436 = vunpack.c.l.b16 %v414
      %v437 = vpack.c.b16 %v430, %v429
      %v438 = vpack.c.b16 %v432, %v431
      %v439 = vpack.c.b16 %v434, %v433
      %v440 = vpack.c.b16 %v436, %v435
      %v446 = vsel %vm233, %v420, 0
      %448 = vmatprep.subr.bf16.mxu0 0
      %449 = vmatpush1.bf16.msra.mxu0 %v437
      %450 = vmatprep.subr.bf16.mxu0 0
      %451 = vmatpush1.bf16.msra.mxu0 %v438
      %452 = vmatprep.subr.bf16.mxu0 0
      %453 = vmatpush1.bf16.msra.mxu0 %v439
      %454 = vmatprep.subr.bf16.mxu0 0
      %455 = vmatpush1.bf16.msra.mxu0 %v440
      %456 = vmatprep.subr.bf16.mxu0 0
      %457 = vmatpush1.bf16.msra.mxu0 0
      %458 = vmatprep.subr.bf16.mxu0 0
      %459 = vmatpush1.bf16.msra.mxu0 0
      %460 = vmatprep.subr.bf16.mxu0 0
      %461 = vmatpush1.bf16.msra.mxu0 0
      %462 = vmatprep.subr.bf16.mxu0 0
      %463 = vmatpush1.bf16.msra.mxu0 0
      %464 = vmatprep.subr.bf16.mxu0 0
      %465 = vmatpush1.bf16.msra.mxu0 0
      %466 = vmatprep.subr.bf16.mxu0 0
      %467 = vmatpush1.bf16.msra.mxu0 0
      %468 = vmatprep.subr.bf16.mxu0 0
      %469 = vmatpush1.bf16.msra.mxu0 0
      %470 = vmatprep.subr.bf16.mxu0 0
      %471 = vmatpush1.bf16.msra.mxu0 0
      %472 = vmatprep.subr.bf16.mxu0 0
      %473 = vmatpush1.bf16.msra.mxu0 0
      %474 = vmatprep.subr.bf16.mxu0 0
      %475 = vmatpush1.bf16.msra.mxu0 0
      %476 = vmatprep.subr.bf16.mxu0 0
      %477 = vmatpush1.bf16.msra.mxu0 0
      %478 = vmatprep.subr.bf16.mxu0 0
      %479 = vmatpush1.bf16.msra.mxu0 0
      %480 = vmatprep.mubr.bf16.mxu0 0
      %481 = vmatmul.mubr.bf16.gmra.mrb[0].mxu0 %v446
      %v482 = vpop.f32.mrb[0].mxu0
      %v483 = vadd.f32 0.0, %v482
      %v484 = vpop.f32.mrb[0].mxu0
      %v485 = vpop.f32.mrb[0].mxu0
      %v486 = vadd.f32 0.0, %v485
      %v487 = vpop.f32.mrb[0].mxu0
      %488 = vdwg.mxu0
      %v489 = vadd.f32 %v400, %v483
      %v490 = vadd.f32 %v403, %v486
      %v491 = vld [vmem:[%s2] sm:$0x1]
      %v493 = vlaneseq
      %v494 = vshrl.u32 %v493, 7
      %v495 = vsub.s32 0, %v494
      %v496 = vrot.slane %v491, %v495
      %v498 = vadd.f32 %v489, %v496
      %v499 = vadd.f32 %v490, %v496
      %v500 = vmax.f32 %v498, 0.0
      %v501 = vmax.f32 %v499, 0.0
      %502 = vst.msk [vmem:[#allocation3 + $0x1] sm:$0xff] %vm233, %v500
      %503 = vst.msk [vmem:[#allocation3 + $0x9] sm:$0xff] %vm233, %v501
      %v504 = vld [vmem:[#allocation3] sm:$0xff]
      %v505 = vld [vmem:[#allocation3 + $0x8] sm:$0xff]
      %v506 = vld [vmem:[#allocation3 + $0x10] sm:$0x3]
      %v507 = vpack.c.bf16 %v505, %v504
      %v508 = vld [vmem:[%s3] sm:$0xf]
      %v509 = vld [vmem:[%s3 + $0x4] sm:$0xf]
      %v510 = vld [vmem:[%s3 + $0x8] sm:$0xf]
      %v511 = vld [vmem:[%s3 + $0xc] sm:$0xf]
      %v512 = vld [vmem:[%s3 + $0x10] sm:$0xf]
      %v513 = vld [vmem:[%s3 + $0x14] sm:$0xf]
      %v514 = vld [vmem:[%s3 + $0x18] sm:$0xf]
      %v515 = vld [vmem:[%s3 + $0x1c] sm:$0xf]
      %v516 = vpack.c.bf16 %v506, %v506
      %s517 = scalar_lea.vmem %s3, 32
      %v518 = vld [vmem:[%s517] sm:$0xf]
      %v519 = vld [vmem:[%s517 + $0x4] sm:$0xf]
      %v520 = vld [vmem:[%s517 + $0x8] sm:$0xf]
      %v521 = vld [vmem:[%s517 + $0xc] sm:$0xf]
      %v522 = vld [vmem:[%s517 + $0x10] sm:$0xf]
      %v523 = vld [vmem:[%s517 + $0x14] sm:$0xf]
      %v524 = vld [vmem:[%s517 + $0x18] sm:$0xf]
      %v525 = vld [vmem:[%s517 + $0x1c] sm:$0xf]
      %v527 = vshrl.u32 %v507, 16
      %v529 = vshll.u32 %v507, 16
      %v531 = vrot.slane %v529, 1
      %v532 = vor.u32 %v527, %v531
      %v534 = vshll.u32 %v516, 16
      %v536 = vrot.slane %v534, 1
      %v537 = vsel %vm258, %v532, %v536
      %v546 = vunpack.c.l.b16 %v518
      %v547 = vunpack.c.l.b16 %v519
      %v548 = vunpack.c.l.b16 %v520
      %v549 = vunpack.c.l.b16 %v521
      %v550 = vunpack.c.l.b16 %v522
      %v551 = vunpack.c.l.b16 %v523
      %v552 = vunpack.c.l.b16 %v524
      %v553 = vunpack.c.l.b16 %v525
      %v554 = vpack.c.b16 %v547, %v546
      %v555 = vpack.c.b16 %v549, %v548
      %v556 = vpack.c.b16 %v551, %v550
      %v557 = vpack.c.b16 %v553, %v552
      %v563 = vsel %vm233, %v537, 0
      %565 = vmatprep.subr.bf16.mxu0 0
      %566 = vmatpush1.bf16.msra.mxu0 %v554
      %567 = vmatprep.subr.bf16.mxu0 0
      %568 = vmatpush1.bf16.msra.mxu0 %v555
      %569 = vmatprep.subr.bf16.mxu0 0
      %570 = vmatpush1.bf16.msra.mxu0 %v556
      %571 = vmatprep.subr.bf16.mxu0 0
      %572 = vmatpush1.bf16.msra.mxu0 %v557
      %573 = vmatprep.subr.bf16.mxu0 0
      %574 = vmatpush1.bf16.msra.mxu0 0
      %575 = vmatprep.subr.bf16.mxu0 0
      %576 = vmatpush1.bf16.msra.mxu0 0
      %577 = vmatprep.subr.bf16.mxu0 0
      %578 = vmatpush1.bf16.msra.mxu0 0
      %579 = vmatprep.subr.bf16.mxu0 0
      %580 = vmatpush1.bf16.msra.mxu0 0
      %581 = vmatprep.subr.bf16.mxu0 0
      %582 = vmatpush1.bf16.msra.mxu0 0
      %583 = vmatprep.subr.bf16.mxu0 0
      %584 = vmatpush1.bf16.msra.mxu0 0
      %585 = vmatprep.subr.bf16.mxu0 0
      %586 = vmatpush1.bf16.msra.mxu0 0
      %587 = vmatprep.subr.bf16.mxu0 0
      %588 = vmatpush1.bf16.msra.mxu0 0
      %589 = vmatprep.subr.bf16.mxu0 0
      %590 = vmatpush1.bf16.msra.mxu0 0
      %591 = vmatprep.subr.bf16.mxu0 0
      %592 = vmatpush1.bf16.msra.mxu0 0
      %593 = vmatprep.subr.bf16.mxu0 0
      %594 = vmatpush1.bf16.msra.mxu0 0
      %595 = vmatprep.subr.bf16.mxu0 0
      %596 = vmatpush1.bf16.msra.mxu0 0
      %597 = vmatprep.mubr.bf16.mxu0 0
      %598 = vmatmul.mubr.bf16.gmra.mrb[0].mxu0 %v563
      %v599 = vpop.f32.mrb[0].mxu0
      %v600 = vadd.f32 0.0, %v599
      %v601 = vpop.f32.mrb[0].mxu0
      %v602 = vpop.f32.mrb[0].mxu0
      %v603 = vadd.f32 0.0, %v602
      %v604 = vpop.f32.mrb[0].mxu0
      %605 = vdwg.mxu0
      %v614 = vunpack.c.l.b16 %v508
      %v615 = vunpack.c.l.b16 %v509
      %v616 = vunpack.c.l.b16 %v510
      %v617 = vunpack.c.l.b16 %v511
      %v618 = vunpack.c.l.b16 %v512
      %v619 = vunpack.c.l.b16 %v513
      %v620 = vunpack.c.l.b16 %v514
      %v621 = vunpack.c.l.b16 %v515
      %v622 = vpack.c.b16 %v615, %v614
      %v623 = vpack.c.b16 %v617, %v616
      %v624 = vpack.c.b16 %v619, %v618
      %v625 = vpack.c.b16 %v621, %v620
      %v630 = vsel %vm233, %v507, 0
      %632 = vmatprep.subr.bf16.mxu0 0
      %633 = vmatpush1.bf16.msra.mxu0 %v622
      %634 = vmatprep.subr.bf16.mxu0 0
      %635 = vmatpush1.bf16.msra.mxu0 %v623
      %636 = vmatprep.subr.bf16.mxu0 0
      %637 = vmatpush1.bf16.msra.mxu0 %v624
      %638 = vmatprep.subr.bf16.mxu0 0
      %639 = vmatpush1.bf16.msra.mxu0 %v625
      %640 = vmatprep.subr.bf16.mxu0 0
      %641 = vmatpush1.bf16.msra.mxu0 0
      %642 = vmatprep.subr.bf16.mxu0 0
      %643 = vmatpush1.bf16.msra.mxu0 0
      %644 = vmatprep.subr.bf16.mxu0 0
      %645 = vmatpush1.bf16.msra.mxu0 0
      %646 = vmatprep.subr.bf16.mxu0 0
      %647 = vmatpush1.bf16.msra.mxu0 0
      %648 = vmatprep.subr.bf16.mxu0 0
      %649 = vmatpush1.bf16.msra.mxu0 0
      %650 = vmatprep.subr.bf16.mxu0 0
      %651 = vmatpush1.bf16.msra.mxu0 0
      %652 = vmatprep.subr.bf16.mxu0 0
      %653 = vmatpush1.bf16.msra.mxu0 0
      %654 = vmatprep.subr.bf16.mxu0 0
      %655 = vmatpush1.bf16.msra.mxu0 0
      %656 = vmatprep.subr.bf16.mxu0 0
      %657 = vmatpush1.bf16.msra.mxu0 0
      %658 = vmatprep.subr.bf16.mxu0 0
      %659 = vmatpush1.bf16.msra.mxu0 0
      %660 = vmatprep.subr.bf16.mxu0 0
      %661 = vmatpush1.bf16.msra.mxu0 0
      %662 = vmatprep.subr.bf16.mxu0 0
      %663 = vmatpush1.bf16.msra.mxu0 0
      %664 = vmatprep.mubr.bf16.mxu0 0
      %665 = vmatmul.mubr.bf16.gmra.mrb[0].mxu0 %v630
      %v666 = vpop.f32.mrb[0].mxu0
      %v667 = vadd.f32 %v600, %v666
      %v668 = vpop.f32.mrb[0].mxu0
      %v669 = vpop.f32.mrb[0].mxu0
      %v670 = vadd.f32 %v603, %v669
      %v671 = vpop.f32.mrb[0].mxu0
      %672 = vdwg.mxu0
      %s673 = scalar_lea.vmem %s3, 64
      %v674 = vld [vmem:[%s673] sm:$0xf]
      %v675 = vld [vmem:[%s673 + $0x4] sm:$0xf]
      %v676 = vld [vmem:[%s673 + $0x8] sm:$0xf]
      %v677 = vld [vmem:[%s673 + $0xc] sm:$0xf]
      %v678 = vld [vmem:[%s673 + $0x10] sm:$0xf]
      %v679 = vld [vmem:[%s673 + $0x14] sm:$0xf]
      %v680 = vld [vmem:[%s673 + $0x18] sm:$0xf]
      %v681 = vld [vmem:[%s673 + $0x1c] sm:$0xf]
      %v684 = vrot.slane %v507, 1
      %v685 = vrot.slane %v516, 1
      %v686 = vsel %vm417, %v684, %v685
      %v695 = vunpack.c.l.b16 %v674
      %v696 = vunpack.c.l.b16 %v675
      %v697 = vunpack.c.l.b16 %v676
      %v698 = vunpack.c.l.b16 %v677
      %v699 = vunpack.c.l.b16 %v678
      %v700 = vunpack.c.l.b16 %v679
      %v701 = vunpack.c.l.b16 %v680
      %v702 = vunpack.c.l.b16 %v681
      %v703 = vpack.c.b16 %v696, %v695
      %v704 = vpack.c.b16 %v698, %v697
      %v705 = vpack.c.b16 %v700, %v699
      %v706 = vpack.c.b16 %v702, %v701
      %v712 = vsel %vm233, %v686, 0
      %714 = vmatprep.subr.bf16.mxu0 0
      %715 = vmatpush1.bf16.msra.mxu0 %v703
      %716 = vmatprep.subr.bf16.mxu0 0
      %717 = vmatpush1.bf16.msra.mxu0 %v704
      %718 = vmatprep.subr.bf16.mxu0 0
      %719 = vmatpush1.bf16.msra.mxu0 %v705
      %720 = vmatprep.subr.bf16.mxu0 0
      %721 = vmatpush1.bf16.msra.mxu0 %v706
      %722 = vmatprep.subr.bf16.mxu0 0
      %723 = vmatpush1.bf16.msra.mxu0 0
      %724 = vmatprep.subr.bf16.mxu0 0
      %725 = vmatpush1.bf16.msra.mxu0 0
      %726 = vmatprep.subr.bf16.mxu0 0
      %727 = vmatpush1.bf16.msra.mxu0 0
      %728 = vmatprep.subr.bf16.mxu0 0
      %729 = vmatpush1.bf16.msra.mxu0 0
      %730 = vmatprep.subr.bf16.mxu0 0
      %731 = vmatpush1.bf16.msra.mxu0 0
      %732 = vmatprep.subr.bf16.mxu0 0
      %733 = vmatpush1.bf16.msra.mxu0 0
      %734 = vmatprep.subr.bf16.mxu0 0
      %735 = vmatpush1.bf16.msra.mxu0 0
      %736 = vmatprep.subr.bf16.mxu0 0
      %737 = vmatpush1.bf16.msra.mxu0 0
      %738 = vmatprep.subr.bf16.mxu0 0
      %739 = vmatpush1.bf16.msra.mxu0 0
      %740 = vmatprep.subr.bf16.mxu0 0
      %741 = vmatpush1.bf16.msra.mxu0 0
      %742 = vmatprep.subr.bf16.mxu0 0
      %743 = vmatpush1.bf16.msra.mxu0 0
      %744 = vmatprep.subr.bf16.mxu0 0
      %745 = vmatpush1.bf16.msra.mxu0 0
      %746 = vmatprep.mubr.bf16.mxu0 0
      %747 = vmatmul.mubr.bf16.gmra.mrb[0].mxu0 %v712
      %v748 = vpop.f32.mrb[0].mxu0
      %v749 = vadd.f32 0.0, %v748
      %v750 = vpop.f32.mrb[0].mxu0
      %v751 = vpop.f32.mrb[0].mxu0
      %v752 = vadd.f32 0.0, %v751
      %v753 = vpop.f32.mrb[0].mxu0
      %754 = vdwg.mxu0
      %v755 = vadd.f32 %v667, %v749
      %v756 = vadd.f32 %v670, %v752
      %v757 = vld [vmem:[%s4] sm:$0x1]
      %v759 = vlaneseq
      %v760 = vshrl.u32 %v759, 7
      %v761 = vsub.s32 0, %v760
      %v762 = vrot.slane %v757, %v761
      %v764 = vadd.f32 %v755, %v762
      %v765 = vadd.f32 %v756, %v762
      %v766 = vadd.f32 %v764, %v226
      %v767 = vadd.f32 %v765, %v227
      %v768 = vmax.f32 %v766, 0.0
      %v769 = vmax.f32 %v767, 0.0
      %770 = vst.msk [vmem:[%s224] sm:$0xff] %vm233, %v768
      %771 = vst.msk [vmem:[%s224 + $0x8] sm:$0xff] %vm233, %v769
      %p772 = scmp.lt.s32.totalorder %s16, 1
      %s773 = scalar_select %p772, %s16, 1
      %s774 = smul.addr %s773, 2
      %s775 = smul.addr %s774, 8
      %s776 = scalar_lea.vmem %s5, %s775
      // Predicated region
      $region41: #{residual_conv_block.1} parent=39 // pred_check
        %p777 = pneg %p144
      $region42: #{residual_conv_block.1} parent=39 // pred_check_branch
        %779 = sbr.rel (%p777) target = $region44
      $region43: #{residual_conv_block.1} parent=39 // pred_region
        _
      $region44: #{residual_conv_block.1} parent=39 // pred_fallthru
        _
    $region40: #{residual_conv_block.1} parent=5 // pred_fallthru
      _
    %p780 = scmp.le.s32.totalorder 2, %s11
    // Predicated region
    $region45: #{residual_conv_block.1} parent=5 // pred_check
      %p781 = pneg %p780
    $region46: #{residual_conv_block.1} parent=5 // pred_check_branch
      %783 = sbr.rel (%p781) target = $region48
    $region47: #{residual_conv_block.1} parent=5 // pred_region
      %s784 = ssub.s32 %s11, 2
      // Predicated region
      $region49: #{residual_conv_block.1} parent=47 // pred_check
        %p785 = pneg %p150
      $region50: #{residual_conv_block.1} parent=47 // pred_check_branch
        %787 = sbr.rel (%p785) target = $region52
      $region51: #{residual_conv_block.1} parent=47 // pred_region
        %p788 = scmp.lt.s32.totalorder %s17, 1
        %s789 = scalar_select %p788, %s17, 1
        %s790 = smul.addr %s789, 2
        %s791 = smul.addr %s790, 8
        %s792 = scalar_lea.vmem %s5, %s791
      $region52: #{residual_conv_block.1} parent=47 // pred_fallthru
        _
    $region48: #{residual_conv_block.1} parent=5 // pred_fallthru
      _
  $region6: #{residual_conv_block.1} parent=0 // loop_footer
    %s15 = sadd.s32 1, %s11
  $region7: #{residual_conv_block.1} parent=0 // loop_footer_branch
    %10 = sbr.rel target = $region3
  $region8: #{residual_conv_block.1} parent=0 // loop_exit
    _

</llo_original>
